<compile_context>
chip_gen: v7x
topology: tpu7x:2x2x1
jax: 0.10.0
libtpu: 0.0.40
codegen_flags: <defaults>
</compile_context>

<pallas_src>
import functools

import jax
import jax.numpy as jnp
from jax.experimental import pallas as pl
from jax.experimental.pallas import tpu as pltpu

N_EMBD = 192
HIDDEN = 4 * N_EMBD
DROPOUT_P = 0.1


def _round_up(a: int, b: int) -> int:
    return ((a + b - 1) // b) * b


def _hash_u32(x):
    """Multiply + murmur3-style finalizer: good avalanche for sequential counters."""
    x = x * jnp.uint32(0x9E3779B9) + jnp.uint32(0x85EBCA77)
    x = x ^ (x >> 16)
    x = x * jnp.uint32(0x85EBCA6B)
    x = x ^ (x >> 13)
    x = x * jnp.uint32(0xC2B2AE35)
    x = x ^ (x >> 16)
    return x


def _ffwd_kernel(seed_ref, x_ref, w1_ref, b1_ref, w2_ref, b2_ref, o_ref,
                 *, training: bool, p: float, tile_m: int):
    # Two fused MXU matmuls (bf16 inputs, f32 accumulation) + ReLU (+ dropout).
    x = x_ref[...]
    h = jnp.dot(x, w1_ref[...], preferred_element_type=jnp.float32) + b1_ref[...]
    h = jnp.maximum(h, 0.0)                                       # ReLU
    y = jnp.dot(h.astype(w2_ref.dtype), w2_ref[...],
                preferred_element_type=jnp.float32) + b2_ref[...]

    if training and p > 0.0:
        # Inverted dropout.  Stateless hash of the global element id; all
        # uint32 arithmetic (wraps safely, no int32 overflow for huge M).
        rows = jax.lax.broadcasted_iota(jnp.uint32, y.shape, 0)
        cols = jax.lax.broadcasted_iota(jnp.uint32, y.shape, 1)
        tile_start = jnp.uint32(pl.program_id(0)) * jnp.uint32(tile_m)
        idx = (tile_start + rows) * jnp.uint32(y.shape[1]) + cols
        bits = _hash_u32(idx ^ seed_ref[0].astype(jnp.uint32))
        thresh = jnp.uint32(min(int(p * 4294967296.0), 4294967295))
        keep = bits >= thresh                                     # P(keep) = 1 - p
        y = jnp.where(keep, y * jnp.float32(1.0 / (1.0 - p)), 0.0)

    o_ref[...] = y.astype(o_ref.dtype)


def feed_forward(x, w1, b1, w2, b2, *, training: bool = False,
                 dropout_p: float = DROPOUT_P, seed: int = 0,
                 tile_m: int = 1024, compute_dtype=jnp.bfloat16):
    """x: [..., n_embd] -> [..., n_embd], matching torch FeedFoward.forward."""
    orig_shape = x.shape
    C = orig_shape[-1]
    H = w1.shape[1]
    assert w1.shape == (C, H) and w2.shape == (H, C)
    assert b1.shape == (H,) and b2.shape == (C,)

    x2 = x.reshape(-1, C)
    M = x2.shape[0]

    # MXU-friendly row tile (multiple of 8 sublanes); large default amortizes
    # the ~0.35 us per-grid-step pipeline overhead.  Ragged M handled by zero
    # padding; padded rows are sliced off below.
    tile = min(tile_m, _round_up(M, 8))
    Mp = _round_up(M, tile)
    if Mp != M:
        x2 = jnp.pad(x2, ((0, Mp - M), (0, 0)))

    # bf16 operands for the MXU, f32 accumulation; biases stay f32.
    xc = x2.astype(compute_dtype)
    w1c = w1.astype(compute_dtype)
    w2c = w2.astype(compute_dtype)
    b1_2d = b1.astype(jnp.float32).reshape(1, H)
    b2_2d = b2.astype(jnp.float32).reshape(1, C)
    seed_arr = jnp.array([seed], dtype=jnp.int32)

    kernel = functools.partial(_ffwd_kernel, training=training,
                               p=float(dropout_p), tile_m=tile)

    isz = jnp.dtype(compute_dtype).itemsize
    cost = pl.CostEstimate(
        flops=4 * Mp * C * H,                 # two matmuls: 2*M*C*H each
        transcendentals=0,
        bytes_accessed=(Mp * C * isz + C * H * isz + H * C * isz
                        + (H + C) * 4 + Mp * C * x.dtype.itemsize),
    )

    out = pl.pallas_call(
        kernel,
        out_shape=jax.ShapeDtypeStruct((Mp, C), x.dtype),
        grid_spec=pltpu.PrefetchScalarGridSpec(
            num_scalar_prefetch=1,                        # dropout seed in SMEM
            grid=(Mp // tile,),
            in_specs=[
                pl.BlockSpec((tile, C), lambda i, seed: (i, 0)),   # x row tile
                # Constant index_map => the pipeline DMAs these once and keeps
                # them VMEM-resident across the whole grid.
                pl.BlockSpec((C, H), lambda i, seed: (0, 0)),      # w1 (resident)
                pl.BlockSpec((1, H), lambda i, seed: (0, 0)),      # b1
                pl.BlockSpec((H, C), lambda i, seed: (0, 0)),      # w2 (resident)
                pl.BlockSpec((1, C), lambda i, seed: (0, 0)),      # b2
            ],
            out_specs=pl.BlockSpec((tile, C), lambda i, seed: (i, 0)),
        ),
        compiler_params=pltpu.CompilerParams(
            dimension_semantics=("parallel",)),           # megacore-shardable (v7x)
        cost_estimate=cost,
    )(seed_arr, xc, w1c, b1_2d, w2c, b2_2d)

    # TODO(synk): for n_embd >= ~2048, add a grid axis over HIDDEN with an f32
    # accumulator instead of keeping w1/w2 fully VMEM-resident (v7x 64 MiB VMEM).
    if Mp != M:
        out = out[:M]
    return out.reshape(orig_shape)


def _init_params(key, n_embd=N_EMBD, hidden=HIDDEN, dtype=jnp.float32):
    # Deterministic init mimicking torch.nn.Linear (uniform(-1/sqrt(fan_in), +)).
    k1, k2, k3, k4 = jax.random.split(key, 4)
    lim1 = 1.0 / (n_embd ** 0.5)
    lim2 = 1.0 / (hidden ** 0.5)
    w1 = jax.random.uniform(k1, (n_embd, hidden), dtype, -lim1, lim1)
    b1 = jax.random.uniform(k2, (hidden,), dtype, -lim1, lim1)
    w2 = jax.random.uniform(k3, (hidden, n_embd), dtype, -lim2, lim2)
    b2 = jax.random.uniform(k4, (n_embd,), dtype, -lim2, lim2)
    return w1, b1, w2, b2


if __name__ == "__main__":
    key = jax.random.PRNGKey(0)
    kx, kp = jax.random.split(key)

    B, T = 2, 8                                   # small batch / seq
    x = jax.random.normal(kx, (B, T, N_EMBD), jnp.float32)
    w1, b1, w2, b2 = _init_params(kp)

    # eval-mode forward (dropout is identity in eval, matching module.eval()).
    y = jax.block_until_ready(feed_forward(x, w1, b1, w2, b2, training=False))
    assert y.shape == (B, T, N_EMBD)

    # reference in plain JAX using the same bf16-matmul / f32-accumulate recipe
    xb = x.reshape(-1, N_EMBD).astype(jnp.bfloat16)
    h_ref = jnp.dot(xb, w1.astype(jnp.bfloat16),
                    preferred_element_type=jnp.float32) + b1
    h_ref = jnp.maximum(h_ref, 0.0)
    ref = jnp.dot(h_ref.astype(jnp.bfloat16), w2.astype(jnp.bfloat16),
                  preferred_element_type=jnp.float32) + b2
    ref = ref.reshape(B, T, N_EMBD).astype(x.dtype)
    assert jnp.allclose(y, ref, atol=2e-2, rtol=2e-2), \
        float(jnp.max(jnp.abs(y - ref)))

    # training-mode path: fused in-kernel dropout (portable hash PRNG).
    y_tr = jax.block_until_ready(
        feed_forward(x, w1, b1, w2, b2, training=True, seed=123))
    assert y_tr.shape == (B, T, N_EMBD)
    assert bool(jnp.all(jnp.isfinite(y_tr)))
    zero_frac = float(jnp.mean(y_tr == 0.0))
    assert 0.02 < zero_frac < 0.25, zero_frac     # ~10% of elements dropped

    # non-dropped elements must equal the eval output scaled by 1/(1-p)
    kept = y_tr != 0.0
    assert jnp.allclose(jnp.where(kept, y_tr, 0.0),
                        jnp.where(kept, y / (1.0 - DROPOUT_P), 0.0),
                        atol=2e-2, rtol=2e-2)

    print("KERNEL_OK")
</pallas_src>

<mosaic_0001>
module attributes {stable_mosaic.version = 11 : i64} {
  func.func @_ffwd_kernel(%arg0: i32, %arg1: memref<1xi32, #tpu.memory_space<smem>>, %arg2: memref<16x192xbf16, #tpu.memory_space<vmem>>, %arg3: memref<192x768xbf16, #tpu.memory_space<vmem>>, %arg4: memref<1x768xf32, #tpu.memory_space<vmem>>, %arg5: memref<768x192xbf16, #tpu.memory_space<vmem>>, %arg6: memref<1x192xf32, #tpu.memory_space<vmem>>, %arg7: memref<16x192xf32, #tpu.memory_space<vmem>>) attributes {dimension_semantics = [#tpu.dimension_semantics<parallel>], iteration_bounds = array<i64: 1>, scalar_prefetch = 1 : i64, scratch_operands = 0 : i64, tpu.core_type = #tpu.core_type<tc>, window_params = [{transform_indices = @transform_0, window_bounds = array<i64: 16, 192>}, {pipeline_mode = #tpu.pipeline_mode<synchronous>, transform_indices = @transform_1, window_bounds = array<i64: 192, 768>}, {pipeline_mode = #tpu.pipeline_mode<synchronous>, transform_indices = @transform_2, window_bounds = array<i64: 1, 768>}, {pipeline_mode = #tpu.pipeline_mode<synchronous>, transform_indices = @transform_3, window_bounds = array<i64: 768, 192>}, {pipeline_mode = #tpu.pipeline_mode<synchronous>, transform_indices = @transform_4, window_bounds = array<i64: 1, 192>}, {transform_indices = @transform_5, window_bounds = array<i64: 16, 192>}]} {
    %c0 = arith.constant 0 : index
    %c0_0 = arith.constant 0 : index
    %0 = vector.load %arg2[%c0, %c0_0] : memref<16x192xbf16, #tpu.memory_space<vmem>>, vector<16x192xbf16>
    %c0_1 = arith.constant 0 : index
    %c0_2 = arith.constant 0 : index
    %1 = vector.load %arg3[%c0_1, %c0_2] : memref<192x768xbf16, #tpu.memory_space<vmem>>, vector<192x768xbf16>
    %cst = arith.constant dense<0.000000e+00> : vector<16x768xf32>
    %2 = tpu.matmul %0, %1, %cst {dimension_numbers = #tpu.dot_dimension_numbers<[1], [0], [0], [1], [0, 0, 1, 1], [], []>} : vector<16x192xbf16>, vector<192x768xbf16>, vector<16x768xf32> -> vector<16x768xf32>
    %c0_3 = arith.constant 0 : index
    %c0_4 = arith.constant 0 : index
    %3 = vector.load %arg4[%c0_3, %c0_4] : memref<1x768xf32, #tpu.memory_space<vmem>>, vector<1x768xf32>
    %4 = vector.broadcast %3 : vector<1x768xf32> to vector<16x768xf32>
    %5 = arith.addf %2, %4 : vector<16x768xf32>
    %cst_5 = arith.constant 0.000000e+00 : f32
    %6 = vector.broadcast %cst_5 : f32 to vector<16x768xf32>
    %7 = arith.maximumf %5, %6 : vector<16x768xf32>
    %8 = arith.truncf %7 : vector<16x768xf32> to vector<16x768xbf16>
    %c0_6 = arith.constant 0 : index
    %c0_7 = arith.constant 0 : index
    %9 = vector.load %arg5[%c0_6, %c0_7] : memref<768x192xbf16, #tpu.memory_space<vmem>>, vector<768x192xbf16>
    %cst_8 = arith.constant dense<0.000000e+00> : vector<16x192xf32>
    %10 = tpu.matmul %8, %9, %cst_8 {dimension_numbers = #tpu.dot_dimension_numbers<[1], [0], [0], [1], [0, 0, 1, 1], [], []>} : vector<16x768xbf16>, vector<768x192xbf16>, vector<16x192xf32> -> vector<16x192xf32>
    %c0_9 = arith.constant 0 : index
    %c0_10 = arith.constant 0 : index
    %11 = vector.load %arg6[%c0_9, %c0_10] : memref<1x192xf32, #tpu.memory_space<vmem>>, vector<1x192xf32>
    %12 = vector.broadcast %11 : vector<1x192xf32> to vector<16x192xf32>
    %13 = arith.addf %10, %12 : vector<16x192xf32>
    %c0_11 = arith.constant 0 : index
    %c0_12 = arith.constant 0 : index
    %14 = vector.load %arg7[%c0_11, %c0_12] : memref<16x192xf32, #tpu.memory_space<vmem>>, vector<16x192xf32>
    tpu.vector_store %arg7[%c0_11, %c0_12], %13 {strides = array<i32>} : memref<16x192xf32, #tpu.memory_space<vmem>>, vector<16x192xf32>,
    return
  }
  func.func @transform_0(%arg0: i32, %arg1: memref<1xi32, #tpu.memory_space<smem>>) -> (i32, i32) {
    %c0_i32 = arith.constant 0 : i32
    %c0_i32_0 = arith.constant 0 : i32
    return %arg0, %c0_i32 : i32, i32
  }
  func.func @transform_1(%arg0: i32, %arg1: memref<1xi32, #tpu.memory_space<smem>>) -> (i32, i32) {
    %c0_i32 = arith.constant 0 : i32
    %c0_i32_0 = arith.constant 0 : i32
    %c0_i32_1 = arith.constant 0 : i32
    return %c0_i32, %c0_i32_0 : i32, i32
  }
  func.func @transform_2(%arg0: i32, %arg1: memref<1xi32, #tpu.memory_space<smem>>) -> (i32, i32) {
    %c0_i32 = arith.constant 0 : i32
    %c0_i32_0 = arith.constant 0 : i32
    %c0_i32_1 = arith.constant 0 : i32
    return %c0_i32, %c0_i32_0 : i32, i32
  }
  func.func @transform_3(%arg0: i32, %arg1: memref<1xi32, #tpu.memory_space<smem>>) -> (i32, i32) {
    %c0_i32 = arith.constant 0 : i32
    %c0_i32_0 = arith.constant 0 : i32
    %c0_i32_1 = arith.constant 0 : i32
    return %c0_i32, %c0_i32_0 : i32, i32
  }
  func.func @transform_4(%arg0: i32, %arg1: memref<1xi32, #tpu.memory_space<smem>>) -> (i32, i32) {
    %c0_i32 = arith.constant 0 : i32
    %c0_i32_0 = arith.constant 0 : i32
    %c0_i32_1 = arith.constant 0 : i32
    return %c0_i32, %c0_i32_0 : i32, i32
  }
  func.func @transform_5(%arg0: i32, %arg1: memref<1xi32, #tpu.memory_space<smem>>) -> (i32, i32) {
    %c0_i32 = arith.constant 0 : i32
    %c0_i32_0 = arith.constant 0 : i32
    return %arg0, %c0_i32 : i32, i32
  }
}

</mosaic_0001>

<llo_original>
// kernel: tpu_custom_call.1
$region0: #{tpu_custom_call.1}
  #allocation0 [shape = 'u32[]', space=smem, size = 0x4, offset = 0x4, fixed_abs, tag = 'smem constant byte address 0x4 - core index']
  #allocation1 [shape = 'u32[144,128]{1,0:T(1,128)}', space=vmem, size = 0x12000, scoped, tag = 'internal scratch']
  #allocation2 [shape = 's32[1]{0}', space=sflag, size = 0x4, scoped, tag = 'scoped memory for tpu_custom_call.1']
  #allocation3 [shape = 's32[1]{0:T(128)S(6)}', space=smem, size = 0x200, scoped, tag = 'prefetched SMEM operand 0']
  %s0 = inlined_call_operand.<no memory space> [shape: s32[1], index: 0, kind: input, shape index: {}]
  %s1 = inlined_call_operand.vmem [shape: bf16[16,192], index: 1, kind: input, shape index: {}]
  %s2 = inlined_call_operand.vmem [shape: bf16[192,768], index: 2, kind: input, shape index: {}]
  %s3 = inlined_call_operand.vmem [shape: f32[1,768], index: 3, kind: input, shape index: {}]
  %s4 = inlined_call_operand.vmem [shape: bf16[768,192], index: 4, kind: input, shape index: {}]
  %s5 = inlined_call_operand.vmem [shape: f32[1,192], index: 5, kind: input, shape index: {}]
  %s6 = inlined_call_operand.hbm [shape: f32[16,192], index: 6, kind: output, shape index: {}]
  %s7 = sld [smem:[#allocation0]]
  $region30: #{tpu_custom_call.1} parent=0
    _
  %s9 = ssub.s32 1, %s7
  %s10 = scalar_select 0, %s9, %s7
  %11 = sst [smem:[#allocation3]] %s0
  $region1: #{tpu_custom_call.1} parent=0
    #allocation4 [shape = 'u8[16384]{0}', space=vmem, size = 0x4000, scoped, tag = 'output window, operand 0, single buffered']
    #allocation5 [shape = 's32[1]{0}', space=sflag, size = 0x4, scoped, tag = 'scoped memory for tpu_custom_call.1']
    %12 = vsyncpa [#allocation5], 0
    // Predicated region
    $region2: #{tpu_custom_call.1} parent=1 // pred_check
      _
    $region3: #{tpu_custom_call.1} parent=1 // pred_check_branch
      %14 = sbr.rel (0) target = $region5
    $region4: #{tpu_custom_call.1} parent=1 // pred_region
      _
    $region5: #{tpu_custom_call.1} parent=1 // pred_fallthru
      _
    // Predicated region
    $region6: #{tpu_custom_call.1} parent=1 // pred_check
      _
    $region7: #{tpu_custom_call.1} parent=1 // pred_check_branch
      %16 = sbr.rel (0) target = $region9
    $region8: #{tpu_custom_call.1} parent=1 // pred_region
      _
    $region9: #{tpu_custom_call.1} parent=1 // pred_fallthru
      _
    // Predicated region
    $region10: #{tpu_custom_call.1} parent=1 // pred_check
      _
    $region11: #{tpu_custom_call.1} parent=1 // pred_check_branch
      %18 = sbr.rel (0) target = $region13
    $region12: #{tpu_custom_call.1} parent=1 // pred_region
      _
    $region13: #{tpu_custom_call.1} parent=1 // pred_fallthru
      _
    // Predicated region
    $region14: #{tpu_custom_call.1} parent=1 // pred_check
      _
    $region15: #{tpu_custom_call.1} parent=1 // pred_check_branch
      %20 = sbr.rel (0) target = $region17
    $region16: #{tpu_custom_call.1} parent=1 // pred_region
      _
    $region17: #{tpu_custom_call.1} parent=1 // pred_fallthru
      _
    // Predicated region
    $region18: #{tpu_custom_call.1} parent=1 // pred_check
      _
    $region19: #{tpu_custom_call.1} parent=1 // pred_check_branch
      %22 = sbr.rel (0) target = $region21
    $region20: #{tpu_custom_call.1} parent=1 // pred_region
      _
    $region21: #{tpu_custom_call.1} parent=1 // pred_fallthru
      _
    %v24 = vld [vmem:[%s1] sm:$0xff]
    %v25 = vld [vmem:[%s1 + $0x8] sm:$0xff]
    %v26 = vld [vmem:[%s2] sm:$0xff]
    %v27 = vld [vmem:[%s2 + $0x8] sm:$0xff]
    %v28 = vld [vmem:[%s2 + $0x10] sm:$0xff]
    %v29 = vld [vmem:[%s2 + $0x18] sm:$0xff]
    %v30 = vld [vmem:[%s2 + $0x20] sm:$0xff]
    %v31 = vld [vmem:[%s2 + $0x28] sm:$0xff]
    %v32 = vld [vmem:[%s2 + $0x30] sm:$0xff]
    %v33 = vld [vmem:[%s2 + $0x38] sm:$0xff]
    %v34 = vld [vmem:[%s2 + $0x40] sm:$0xff]
    %v35 = vld [vmem:[%s2 + $0x48] sm:$0xff]
    %v36 = vld [vmem:[%s2 + $0x50] sm:$0xff]
    %v37 = vld [vmem:[%s2 + $0x58] sm:$0xff]
    %v38 = vld [vmem:[%s2 + $0x60] sm:$0xff]
    %v39 = vld [vmem:[%s2 + $0x68] sm:$0xff]
    %v40 = vld [vmem:[%s2 + $0x70] sm:$0xff]
    %v41 = vld [vmem:[%s2 + $0x78] sm:$0xff]
    %v42 = vld [vmem:[%s2 + $0x80] sm:$0xff]
    %v43 = vld [vmem:[%s2 + $0x88] sm:$0xff]
    %v44 = vld [vmem:[%s2 + $0x90] sm:$0xff]
    %v45 = vld [vmem:[%s2 + $0x98] sm:$0xff]
    %v46 = vld [vmem:[%s2 + $0xa0] sm:$0xff]
    %v47 = vld [vmem:[%s2 + $0xa8] sm:$0xff]
    %v48 = vld [vmem:[%s2 + $0xb0] sm:$0xff]
    %v49 = vld [vmem:[%s2 + $0xb8] sm:$0xff]
    %v50 = vld [vmem:[%s2 + $0xc0] sm:$0xff]
    %v51 = vld [vmem:[%s2 + $0xc8] sm:$0xff]
    %v52 = vld [vmem:[%s2 + $0xd0] sm:$0xff]
    %v53 = vld [vmem:[%s2 + $0xd8] sm:$0xff]
    %v54 = vld [vmem:[%s2 + $0xe0] sm:$0xff]
    %v55 = vld [vmem:[%s2 + $0xe8] sm:$0xff]
    %v56 = vld [vmem:[%s2 + $0xf0] sm:$0xff]
    %v57 = vld [vmem:[%s2 + $0xf8] sm:$0xff]
    %v58 = vld [vmem:[%s2 + $0x100] sm:$0xff]
    %v59 = vld [vmem:[%s2 + $0x108] sm:$0xff]
    %v60 = vld [vmem:[%s2 + $0x110] sm:$0xff]
    %v61 = vld [vmem:[%s2 + $0x118] sm:$0xff]
    %v62 = vld [vmem:[%s2 + $0x120] sm:$0xff]
    %v63 = vld [vmem:[%s2 + $0x128] sm:$0xff]
    %v64 = vld [vmem:[%s2 + $0x130] sm:$0xff]
    %v65 = vld [vmem:[%s2 + $0x138] sm:$0xff]
    %v66 = vld [vmem:[%s2 + $0x140] sm:$0xff]
    %v67 = vld [vmem:[%s2 + $0x148] sm:$0xff]
    %v68 = vld [vmem:[%s2 + $0x150] sm:$0xff]
    %v69 = vld [vmem:[%s2 + $0x158] sm:$0xff]
    %v70 = vld [vmem:[%s2 + $0x160] sm:$0xff]
    %v71 = vld [vmem:[%s2 + $0x168] sm:$0xff]
    %v72 = vld [vmem:[%s2 + $0x170] sm:$0xff]
    %v73 = vld [vmem:[%s2 + $0x178] sm:$0xff]
    %v74 = vld [vmem:[%s2 + $0x180] sm:$0xff]
    %v75 = vld [vmem:[%s2 + $0x188] sm:$0xff]
    %v76 = vld [vmem:[%s2 + $0x190] sm:$0xff]
    %v77 = vld [vmem:[%s2 + $0x198] sm:$0xff]
    %v78 = vld [vmem:[%s2 + $0x1a0] sm:$0xff]
    %v79 = vld [vmem:[%s2 + $0x1a8] sm:$0xff]
    %v80 = vld [vmem:[%s2 + $0x1b0] sm:$0xff]
    %v81 = vld [vmem:[%s2 + $0x1b8] sm:$0xff]
    %v82 = vld [vmem:[%s2 + $0x1c0] sm:$0xff]
    %v83 = vld [vmem:[%s2 + $0x1c8] sm:$0xff]
    %v84 = vld [vmem:[%s2 + $0x1d0] sm:$0xff]
    %v85 = vld [vmem:[%s2 + $0x1d8] sm:$0xff]
    %v86 = vld [vmem:[%s2 + $0x1e0] sm:$0xff]
    %v87 = vld [vmem:[%s2 + $0x1e8] sm:$0xff]
    %v88 = vld [vmem:[%s2 + $0x1f0] sm:$0xff]
    %v89 = vld [vmem:[%s2 + $0x1f8] sm:$0xff]
    %v90 = vld [vmem:[%s2 + $0x200] sm:$0xff]
    %v91 = vld [vmem:[%s2 + $0x208] sm:$0xff]
    %v92 = vld [vmem:[%s2 + $0x210] sm:$0xff]
    %v93 = vld [vmem:[%s2 + $0x218] sm:$0xff]
    %v94 = vld [vmem:[%s2 + $0x220] sm:$0xff]
    %v95 = vld [vmem:[%s2 + $0x228] sm:$0xff]
    %v96 = vld [vmem:[%s2 + $0x230] sm:$0xff]
    %v97 = vld [vmem:[%s2 + $0x238] sm:$0xff]
    %v98 = vld [vmem:[%s3] sm:$0x3f]
    %v100 = vlaneseq
    %v101 = vshrl.u32 %v100, 7
    %v102 = vsub.s32 0, %v101
    %v103 = vrot.slane %v98, %v102
    %v104 = vlaneseq
    %v105 = vshrl.u32 %v104, 7
    %v106 = vsub.s32 1, %v105
    %v107 = vrot.slane %v98, %v106
    %v108 = vlaneseq
    %v109 = vshrl.u32 %v108, 7
    %v110 = vsub.s32 2, %v109
    %v111 = vrot.slane %v98, %v110
    %v112 = vlaneseq
    %v113 = vshrl.u32 %v112, 7
    %v114 = vsub.s32 3, %v113
    %v115 = vrot.slane %v98, %v114
    %v116 = vlaneseq
    %v117 = vshrl.u32 %v116, 7
    %v118 = vsub.s32 4, %v117
    %v119 = vrot.slane %v98, %v118
    %v120 = vlaneseq
    %v121 = vshrl.u32 %v120, 7
    %v122 = vsub.s32 5, %v121
    %v123 = vrot.slane %v98, %v122
    %v132 = vunpack.c.l.b16 %v24
    %v133 = vunpack.c.h.b16 %v24
    %v134 = vunpack.c.l.b16 %v25
    %v135 = vunpack.c.h.b16 %v25
    %v136 = vpack.c.b16 %v134, %v132
    %v137 = vpack.c.b16 %v135, %v133
    %v211 = vunpack.c.l.b16 %v26
    %v212 = vunpack.c.h.b16 %v26
    %v213 = vunpack.c.l.b16 %v27
    %v214 = vunpack.c.h.b16 %v27
    %v215 = vunpack.c.l.b16 %v28
    %v216 = vunpack.c.h.b16 %v28
    %v217 = vunpack.c.l.b16 %v29
    %v218 = vunpack.c.h.b16 %v29
    %v219 = vunpack.c.l.b16 %v30
    %v220 = vunpack.c.h.b16 %v30
    %v221 = vunpack.c.l.b16 %v31
    %v222 = vunpack.c.h.b16 %v31
    %v223 = vunpack.c.l.b16 %v32
    %v224 = vunpack.c.h.b16 %v32
    %v225 = vunpack.c.l.b16 %v33
    %v226 = vunpack.c.h.b16 %v33
    %v227 = vunpack.c.l.b16 %v34
    %v228 = vunpack.c.h.b16 %v34
    %v229 = vunpack.c.l.b16 %v35
    %v230 = vunpack.c.h.b16 %v35
    %v231 = vunpack.c.l.b16 %v36
    %v232 = vunpack.c.h.b16 %v36
    %v233 = vunpack.c.l.b16 %v37
    %v234 = vunpack.c.h.b16 %v37
    %v235 = vunpack.c.l.b16 %v38
    %v236 = vunpack.c.h.b16 %v38
    %v237 = vunpack.c.l.b16 %v39
    %v238 = vunpack.c.h.b16 %v39
    %v239 = vunpack.c.l.b16 %v40
    %v240 = vunpack.c.h.b16 %v40
    %v241 = vunpack.c.l.b16 %v41
    %v242 = vunpack.c.h.b16 %v41
    %v243 = vunpack.c.l.b16 %v42
    %v244 = vunpack.c.h.b16 %v42
    %v245 = vunpack.c.l.b16 %v43
    %v246 = vunpack.c.h.b16 %v43
    %v247 = vunpack.c.l.b16 %v44
    %v248 = vunpack.c.h.b16 %v44
    %v249 = vunpack.c.l.b16 %v45
    %v250 = vunpack.c.h.b16 %v45
    %v251 = vunpack.c.l.b16 %v46
    %v252 = vunpack.c.h.b16 %v46
    %v253 = vunpack.c.l.b16 %v47
    %v254 = vunpack.c.h.b16 %v47
    %v255 = vunpack.c.l.b16 %v48
    %v256 = vunpack.c.h.b16 %v48
    %v257 = vunpack.c.l.b16 %v49
    %v258 = vunpack.c.h.b16 %v49
    %v259 = vunpack.c.l.b16 %v50
    %v260 = vunpack.c.h.b16 %v50
    %v261 = vunpack.c.l.b16 %v51
    %v262 = vunpack.c.h.b16 %v51
    %v263 = vunpack.c.l.b16 %v52
    %v264 = vunpack.c.h.b16 %v52
    %v265 = vunpack.c.l.b16 %v53
    %v266 = vunpack.c.h.b16 %v53
    %v267 = vunpack.c.l.b16 %v54
    %v268 = vunpack.c.h.b16 %v54
    %v269 = vunpack.c.l.b16 %v55
    %v270 = vunpack.c.h.b16 %v55
    %v271 = vunpack.c.l.b16 %v56
    %v272 = vunpack.c.h.b16 %v56
    %v273 = vunpack.c.l.b16 %v57
    %v274 = vunpack.c.h.b16 %v57
    %v275 = vunpack.c.l.b16 %v58
    %v276 = vunpack.c.h.b16 %v58
    %v277 = vunpack.c.l.b16 %v59
    %v278 = vunpack.c.h.b16 %v59
    %v279 = vunpack.c.l.b16 %v60
    %v280 = vunpack.c.h.b16 %v60
    %v281 = vunpack.c.l.b16 %v61
    %v282 = vunpack.c.h.b16 %v61
    %v283 = vunpack.c.l.b16 %v62
    %v284 = vunpack.c.h.b16 %v62
    %v285 = vunpack.c.l.b16 %v63
    %v286 = vunpack.c.h.b16 %v63
    %v287 = vunpack.c.l.b16 %v64
    %v288 = vunpack.c.h.b16 %v64
    %v289 = vunpack.c.l.b16 %v65
    %v290 = vunpack.c.h.b16 %v65
    %v291 = vunpack.c.l.b16 %v66
    %v292 = vunpack.c.h.b16 %v66
    %v293 = vunpack.c.l.b16 %v67
    %v294 = vunpack.c.h.b16 %v67
    %v295 = vunpack.c.l.b16 %v68
    %v296 = vunpack.c.h.b16 %v68
    %v297 = vunpack.c.l.b16 %v69
    %v298 = vunpack.c.h.b16 %v69
    %v299 = vunpack.c.l.b16 %v70
    %v300 = vunpack.c.h.b16 %v70
    %v301 = vunpack.c.l.b16 %v71
    %v302 = vunpack.c.h.b16 %v71
    %v303 = vunpack.c.l.b16 %v72
    %v304 = vunpack.c.h.b16 %v72
    %v305 = vunpack.c.l.b16 %v73
    %v306 = vunpack.c.h.b16 %v73
    %v307 = vunpack.c.l.b16 %v74
    %v308 = vunpack.c.h.b16 %v74
    %v309 = vunpack.c.l.b16 %v75
    %v310 = vunpack.c.h.b16 %v75
    %v311 = vunpack.c.l.b16 %v76
    %v312 = vunpack.c.h.b16 %v76
    %v313 = vunpack.c.l.b16 %v77
    %v314 = vunpack.c.h.b16 %v77
    %v315 = vunpack.c.l.b16 %v78
    %v316 = vunpack.c.h.b16 %v78
    %v317 = vunpack.c.l.b16 %v79
    %v318 = vunpack.c.h.b16 %v79
    %v319 = vunpack.c.l.b16 %v80
    %v320 = vunpack.c.h.b16 %v80
    %v321 = vunpack.c.l.b16 %v81
    %v322 = vunpack.c.h.b16 %v81
    %v323 = vunpack.c.l.b16 %v82
    %v324 = vunpack.c.h.b16 %v82
    %v325 = vunpack.c.l.b16 %v83
    %v326 = vunpack.c.h.b16 %v83
    %v327 = vunpack.c.l.b16 %v84
    %v328 = vunpack.c.h.b16 %v84
    %v329 = vunpack.c.l.b16 %v85
    %v330 = vunpack.c.h.b16 %v85
    %v331 = vunpack.c.l.b16 %v86
    %v332 = vunpack.c.h.b16 %v86
    %v333 = vunpack.c.l.b16 %v87
    %v334 = vunpack.c.h.b16 %v87
    %v335 = vunpack.c.l.b16 %v88
    %v336 = vunpack.c.h.b16 %v88
    %v337 = vunpack.c.l.b16 %v89
    %v338 = vunpack.c.h.b16 %v89
    %v339 = vunpack.c.l.b16 %v90
    %v340 = vunpack.c.h.b16 %v90
    %v341 = vunpack.c.l.b16 %v91
    %v342 = vunpack.c.h.b16 %v91
    %v343 = vunpack.c.l.b16 %v92
    %v344 = vunpack.c.h.b16 %v92
    %v345 = vunpack.c.l.b16 %v93
    %v346 = vunpack.c.h.b16 %v93
    %v347 = vunpack.c.l.b16 %v94
    %v348 = vunpack.c.h.b16 %v94
    %v349 = vunpack.c.l.b16 %v95
    %v350 = vunpack.c.h.b16 %v95
    %v351 = vunpack.c.l.b16 %v96
    %v352 = vunpack.c.h.b16 %v96
    %v353 = vunpack.c.l.b16 %v97
    %v354 = vunpack.c.h.b16 %v97
    %v355 = vpack.c.b16 %v217, %v211
    %v356 = vpack.c.b16 %v218, %v212
    %v357 = vpack.c.b16 %v219, %v213
    %v358 = vpack.c.b16 %v220, %v214
    %v359 = vpack.c.b16 %v221, %v215
    %v360 = vpack.c.b16 %v222, %v216
    %v361 = vpack.c.b16 %v229, %v223
    %v362 = vpack.c.b16 %v230, %v224
    %v363 = vpack.c.b16 %v231, %v225
    %v364 = vpack.c.b16 %v232, %v226
    %v365 = vpack.c.b16 %v233, %v227
    %v366 = vpack.c.b16 %v234, %v228
    %v367 = vpack.c.b16 %v241, %v235
    %v368 = vpack.c.b16 %v242, %v236
    %v369 = vpack.c.b16 %v243, %v237
    %v370 = vpack.c.b16 %v244, %v238
    %v371 = vpack.c.b16 %v245, %v239
    %v372 = vpack.c.b16 %v246, %v240
    %v373 = vpack.c.b16 %v253, %v247
    %v374 = vpack.c.b16 %v254, %v248
    %v375 = vpack.c.b16 %v255, %v249
    %v376 = vpack.c.b16 %v256, %v250
    %v377 = vpack.c.b16 %v257, %v251
    %v378 = vpack.c.b16 %v258, %v252
    %v379 = vpack.c.b16 %v265, %v259
    %v380 = vpack.c.b16 %v266, %v260
    %v381 = vpack.c.b16 %v267, %v261
    %v382 = vpack.c.b16 %v268, %v262
    %v383 = vpack.c.b16 %v269, %v263
    %v384 = vpack.c.b16 %v270, %v264
    %v385 = vpack.c.b16 %v277, %v271
    %v386 = vpack.c.b16 %v278, %v272
    %v387 = vpack.c.b16 %v279, %v273
    %v388 = vpack.c.b16 %v280, %v274
    %v389 = vpack.c.b16 %v281, %v275
    %v390 = vpack.c.b16 %v282, %v276
    %v391 = vpack.c.b16 %v289, %v283
    %v392 = vpack.c.b16 %v290, %v284
    %v393 = vpack.c.b16 %v291, %v285
    %v394 = vpack.c.b16 %v292, %v286
    %v395 = vpack.c.b16 %v293, %v287
    %v396 = vpack.c.b16 %v294, %v288
    %v397 = vpack.c.b16 %v301, %v295
    %v398 = vpack.c.b16 %v302, %v296
    %v399 = vpack.c.b16 %v303, %v297
    %v400 = vpack.c.b16 %v304, %v298
    %v401 = vpack.c.b16 %v305, %v299
    %v402 = vpack.c.b16 %v306, %v300
    %v403 = vpack.c.b16 %v313, %v307
    %v404 = vpack.c.b16 %v314, %v308
    %v405 = vpack.c.b16 %v315, %v309
    %v406 = vpack.c.b16 %v316, %v310
    %v407 = vpack.c.b16 %v317, %v311
    %v408 = vpack.c.b16 %v318, %v312
    %v409 = vpack.c.b16 %v325, %v319
    %v410 = vpack.c.b16 %v326, %v320
    %v411 = vpack.c.b16 %v327, %v321
    %v412 = vpack.c.b16 %v328, %v322
    %v413 = vpack.c.b16 %v329, %v323
    %v414 = vpack.c.b16 %v330, %v324
    %v415 = vpack.c.b16 %v337, %v331
    %v416 = vpack.c.b16 %v338, %v332
    %v417 = vpack.c.b16 %v339, %v333
    %v418 = vpack.c.b16 %v340, %v334
    %v419 = vpack.c.b16 %v341, %v335
    %v420 = vpack.c.b16 %v342, %v336
    %v421 = vpack.c.b16 %v349, %v343
    %v422 = vpack.c.b16 %v350, %v344
    %v423 = vpack.c.b16 %v351, %v345
    %v424 = vpack.c.b16 %v352, %v346
    %v425 = vpack.c.b16 %v353, %v347
    %v426 = vpack.c.b16 %v354, %v348
    %vm499 = vcmask 523264
    %v501 = vsel %vm499, %v137, 0
    %503 = vmatprep.subr.bf16.mxu0 %v356
    %504 = vmatpush1.bf16.msra.mxu0 %v355
    %505 = vmatprep.subr.bf16.mxu0 %v362
    %506 = vmatpush1.bf16.msra.mxu0 %v361
    %507 = vmatprep.subr.bf16.mxu0 %v368
    %508 = vmatpush1.bf16.msra.mxu0 %v367
    %509 = vmatprep.subr.bf16.mxu0 %v374
    %510 = vmatpush1.bf16.msra.mxu0 %v373
    %511 = vmatprep.subr.bf16.mxu0 %v380
    %512 = vmatpush1.bf16.msra.mxu0 %v379
    %513 = vmatprep.subr.bf16.mxu0 %v386
    %514 = vmatpush1.bf16.msra.mxu0 %v385
    %515 = vmatprep.subr.bf16.mxu0 %v392
    %516 = vmatpush1.bf16.msra.mxu0 %v391
    %517 = vmatprep.subr.bf16.mxu0 %v398
    %518 = vmatpush1.bf16.msra.mxu0 %v397
    %519 = vmatprep.subr.bf16.mxu0 %v404
    %520 = vmatpush1.bf16.msra.mxu0 %v403
    %521 = vmatprep.subr.bf16.mxu0 %v410
    %522 = vmatpush1.bf16.msra.mxu0 %v409
    %523 = vmatprep.subr.bf16.mxu0 %v416
    %524 = vmatpush1.bf16.msra.mxu0 %v415
    %525 = vmatprep.subr.bf16.mxu0 %v422
    %526 = vmatpush1.bf16.msra.mxu0 %v421
    %527 = vmatprep.subr.bf16.mxu0 0
    %528 = vmatpush1.bf16.msra.mxu0 0
    %529 = vmatprep.subr.bf16.mxu0 0
    %530 = vmatpush1.bf16.msra.mxu0 0
    %531 = vmatprep.subr.bf16.mxu0 0
    %532 = vmatpush1.bf16.msra.mxu0 0
    %533 = vmatprep.subr.bf16.mxu0 0
    %534 = vmatpush1.bf16.msra.mxu0 0
    %535 = vmatprep.mubr.bf16.mxu0 %v501
    %536 = vmatmul.mubr.bf16.gmra.mrb[0].mxu0 %v136
    %v537 = vpop.f32.mrb[0].mxu0
    %v538 = vadd.f32 %v103, %v537
    %v539 = vpop.f32.mrb[0].mxu0
    %v540 = vadd.f32 %v107, %v539
    %v541 = vpop.f32.mrb[0].mxu0
    %v542 = vadd.f32 %v103, %v541
    %v543 = vpop.f32.mrb[0].mxu0
    %v544 = vadd.f32 %v107, %v543
    %545 = vdwg.mxu0
    %546 = vmatprep.subr.bf16.mxu0 %v358
    %547 = vmatpush1.bf16.msra.mxu0 %v357
    %548 = vmatprep.subr.bf16.mxu0 %v364
    %549 = vmatpush1.bf16.msra.mxu0 %v363
    %550 = vmatprep.subr.bf16.mxu0 %v370
    %551 = vmatpush1.bf16.msra.mxu0 %v369
    %552 = vmatprep.subr.bf16.mxu0 %v376
    %553 = vmatpush1.bf16.msra.mxu0 %v375
    %554 = vmatprep.subr.bf16.mxu0 %v382
    %555 = vmatpush1.bf16.msra.mxu0 %v381
    %556 = vmatprep.subr.bf16.mxu0 %v388
    %557 = vmatpush1.bf16.msra.mxu0 %v387
    %558 = vmatprep.subr.bf16.mxu0 %v394
    %559 = vmatpush1.bf16.msra.mxu0 %v393
    %560 = vmatprep.subr.bf16.mxu0 %v400
    %561 = vmatpush1.bf16.msra.mxu0 %v399
    %562 = vmatprep.subr.bf16.mxu0 %v406
    %563 = vmatpush1.bf16.msra.mxu0 %v405
    %564 = vmatprep.subr.bf16.mxu0 %v412
    %565 = vmatpush1.bf16.msra.mxu0 %v411
    %566 = vmatprep.subr.bf16.mxu0 %v418
    %567 = vmatpush1.bf16.msra.mxu0 %v417
    %568 = vmatprep.subr.bf16.mxu0 %v424
    %569 = vmatpush1.bf16.msra.mxu0 %v423
    %570 = vmatprep.subr.bf16.mxu0 0
    %571 = vmatpush1.bf16.msra.mxu0 0
    %572 = vmatprep.subr.bf16.mxu0 0
    %573 = vmatpush1.bf16.msra.mxu0 0
    %574 = vmatprep.subr.bf16.mxu0 0
    %575 = vmatpush1.bf16.msra.mxu0 0
    %576 = vmatprep.subr.bf16.mxu0 0
    %577 = vmatpush1.bf16.msra.mxu0 0
    %578 = vmatprep.mubr.bf16.mxu0 %v501
    %579 = vmatmul.mubr.bf16.gmra.mrb[0].mxu0 %v136
    %v580 = vpop.f32.mrb[0].mxu0
    %v581 = vadd.f32 %v111, %v580
    %v582 = vpop.f32.mrb[0].mxu0
    %v583 = vadd.f32 %v115, %v582
    %v584 = vpop.f32.mrb[0].mxu0
    %v585 = vadd.f32 %v111, %v584
    %v586 = vpop.f32.mrb[0].mxu0
    %v587 = vadd.f32 %v115, %v586
    %588 = vdwg.mxu0
    %589 = vmatprep.subr.bf16.mxu0 %v360
    %590 = vmatpush1.bf16.msra.mxu0 %v359
    %591 = vmatprep.subr.bf16.mxu0 %v366
    %592 = vmatpush1.bf16.msra.mxu0 %v365
    %593 = vmatprep.subr.bf16.mxu0 %v372
    %594 = vmatpush1.bf16.msra.mxu0 %v371
    %595 = vmatprep.subr.bf16.mxu0 %v378
    %596 = vmatpush1.bf16.msra.mxu0 %v377
    %597 = vmatprep.subr.bf16.mxu0 %v384
    %598 = vmatpush1.bf16.msra.mxu0 %v383
    %599 = vmatprep.subr.bf16.mxu0 %v390
    %600 = vmatpush1.bf16.msra.mxu0 %v389
    %601 = vmatprep.subr.bf16.mxu0 %v396
    %602 = vmatpush1.bf16.msra.mxu0 %v395
    %603 = vmatprep.subr.bf16.mxu0 %v402
    %604 = vmatpush1.bf16.msra.mxu0 %v401
    %605 = vmatprep.subr.bf16.mxu0 %v408
    %606 = vmatpush1.bf16.msra.mxu0 %v407
    %607 = vmatprep.subr.bf16.mxu0 %v414
    %608 = vmatpush1.bf16.msra.mxu0 %v413
    %609 = vmatprep.subr.bf16.mxu0 %v420
    %610 = vmatpush1.bf16.msra.mxu0 %v419
    %611 = vmatprep.subr.bf16.mxu0 %v426
    %612 = vmatpush1.bf16.msra.mxu0 %v425
    %613 = vmatprep.subr.bf16.mxu0 0
    %614 = vmatpush1.bf16.msra.mxu0 0
    %615 = vmatprep.subr.bf16.mxu0 0
    %616 = vmatpush1.bf16.msra.mxu0 0
    %617 = vmatprep.subr.bf16.mxu0 0
    %618 = vmatpush1.bf16.msra.mxu0 0
    %619 = vmatprep.subr.bf16.mxu0 0
    %620 = vmatpush1.bf16.msra.mxu0 0
    %621 = vmatprep.mubr.bf16.mxu0 %v501
    %622 = vmatmul.mubr.bf16.gmra.mrb[0].mxu0 %v136
    %v623 = vpop.f32.mrb[0].mxu0
    %v624 = vadd.f32 %v119, %v623
    %v625 = vpop.f32.mrb[0].mxu0
    %v626 = vadd.f32 %v123, %v625
    %v627 = vpop.f32.mrb[0].mxu0
    %v628 = vadd.f32 %v119, %v627
    %v629 = vpop.f32.mrb[0].mxu0
    %v630 = vadd.f32 %v123, %v629
    %631 = vdwg.mxu0
    %v632 = vmax.f32 %v538, 0.0
    %v633 = vmax.f32 %v540, 0.0
    %v634 = vmax.f32 %v581, 0.0
    %v635 = vmax.f32 %v583, 0.0
    %v636 = vmax.f32 %v624, 0.0
    %v637 = vmax.f32 %v626, 0.0
    %v638 = vmax.f32 %v542, 0.0
    %v639 = vmax.f32 %v544, 0.0
    %v640 = vmax.f32 %v585, 0.0
    %v641 = vmax.f32 %v587, 0.0
    %v642 = vmax.f32 %v628, 0.0
    %v643 = vmax.f32 %v630, 0.0
    %v644 = vpack.c.bf16 %v638, %v632
    %v645 = vpack.c.bf16 %v639, %v633
    %v646 = vpack.c.bf16 %v640, %v634
    %v647 = vpack.c.bf16 %v641, %v635
    %v648 = vpack.c.bf16 %v642, %v636
    %v649 = vpack.c.bf16 %v643, %v637
    %v650 = vld [vmem:[%s4] sm:$0xff]
    %v651 = vld [vmem:[%s4 + $0x8] sm:$0xff]
    %v652 = vld [vmem:[%s4 + $0x10] sm:$0xff]
    %v653 = vld [vmem:[%s4 + $0x18] sm:$0xff]
    %v654 = vld [vmem:[%s4 + $0x20] sm:$0xff]
    %v655 = vld [vmem:[%s4 + $0x28] sm:$0xff]
    %v656 = vld [vmem:[%s4 + $0x30] sm:$0xff]
    %v657 = vld [vmem:[%s4 + $0x38] sm:$0xff]
    %v658 = vld [vmem:[%s4 + $0x40] sm:$0xff]
    %v659 = vld [vmem:[%s4 + $0x48] sm:$0xff]
    %v660 = vld [vmem:[%s4 + $0x50] sm:$0xff]
    %v661 = vld [vmem:[%s4 + $0x58] sm:$0xff]
    %v662 = vld [vmem:[%s4 + $0x60] sm:$0xff]
    %v663 = vld [vmem:[%s4 + $0x68] sm:$0xff]
    %v664 = vld [vmem:[%s4 + $0x70] sm:$0xff]
    %v665 = vld [vmem:[%s4 + $0x78] sm:$0xff]
    %v666 = vld [vmem:[%s4 + $0x80] sm:$0xff]
    %v667 = vld [vmem:[%s4 + $0x88] sm:$0xff]
    %v668 = vld [vmem:[%s4 + $0x90] sm:$0xff]
    %v669 = vld [vmem:[%s4 + $0x98] sm:$0xff]
    %v670 = vld [vmem:[%s4 + $0xa0] sm:$0xff]
    %v671 = vld [vmem:[%s4 + $0xa8] sm:$0xff]
    %v672 = vld [vmem:[%s4 + $0xb0] sm:$0xff]
    %v673 = vld [vmem:[%s4 + $0xb8] sm:$0xff]
    %v674 = vld [vmem:[%s4 + $0xc0] sm:$0xff]
    %v675 = vld [vmem:[%s4 + $0xc8] sm:$0xff]
    %v676 = vld [vmem:[%s4 + $0xd0] sm:$0xff]
    %v677 = vld [vmem:[%s4 + $0xd8] sm:$0xff]
    %v678 = vld [vmem:[%s4 + $0xe0] sm:$0xff]
    %v679 = vld [vmem:[%s4 + $0xe8] sm:$0xff]
    %v680 = vld [vmem:[%s4 + $0xf0] sm:$0xff]
    %v681 = vld [vmem:[%s4 + $0xf8] sm:$0xff]
    %v682 = vld [vmem:[%s4 + $0x100] sm:$0xff]
    %v683 = vld [vmem:[%s4 + $0x108] sm:$0xff]
    %v684 = vld [vmem:[%s4 + $0x110] sm:$0xff]
    %v685 = vld [vmem:[%s4 + $0x118] sm:$0xff]
    %v686 = vld [vmem:[%s4 + $0x120] sm:$0xff]
    %v687 = vld [vmem:[%s4 + $0x128] sm:$0xff]
    %v688 = vld [vmem:[%s4 + $0x130] sm:$0xff]
    %v689 = vld [vmem:[%s4 + $0x138] sm:$0xff]
    %v690 = vld [vmem:[%s4 + $0x140] sm:$0xff]
    %v691 = vld [vmem:[%s4 + $0x148] sm:$0xff]
    %v692 = vld [vmem:[%s4 + $0x150] sm:$0xff]
    %v693 = vld [vmem:[%s4 + $0x158] sm:$0xff]
    %v694 = vld [vmem:[%s4 + $0x160] sm:$0xff]
    %v695 = vld [vmem:[%s4 + $0x168] sm:$0xff]
    %v696 = vld [vmem:[%s4 + $0x170] sm:$0xff]
    %v697 = vld [vmem:[%s4 + $0x178] sm:$0xff]
    %v698 = vld [vmem:[%s4 + $0x180] sm:$0xff]
    %v699 = vld [vmem:[%s4 + $0x188] sm:$0xff]
    %v700 = vld [vmem:[%s4 + $0x190] sm:$0xff]
    %v701 = vld [vmem:[%s4 + $0x198] sm:$0xff]
    %v702 = vld [vmem:[%s4 + $0x1a0] sm:$0xff]
    %v703 = vld [vmem:[%s4 + $0x1a8] sm:$0xff]
    %v704 = vld [vmem:[%s4 + $0x1b0] sm:$0xff]
    %v705 = vld [vmem:[%s4 + $0x1b8] sm:$0xff]
    %v706 = vld [vmem:[%s4 + $0x1c0] sm:$0xff]
    %v707 = vld [vmem:[%s4 + $0x1c8] sm:$0xff]
    %v708 = vld [vmem:[%s4 + $0x1d0] sm:$0xff]
    %v709 = vld [vmem:[%s4 + $0x1d8] sm:$0xff]
    %v710 = vld [vmem:[%s4 + $0x1e0] sm:$0xff]
    %v711 = vld [vmem:[%s4 + $0x1e8] sm:$0xff]
    %v712 = vld [vmem:[%s4 + $0x1f0] sm:$0xff]
    %v713 = vld [vmem:[%s4 + $0x1f8] sm:$0xff]
    %v714 = vld [vmem:[%s4 + $0x200] sm:$0xff]
    %v715 = vld [vmem:[%s4 + $0x208] sm:$0xff]
    %v716 = vld [vmem:[%s4 + $0x210] sm:$0xff]
    %v717 = vld [vmem:[%s4 + $0x218] sm:$0xff]
    %v718 = vld [vmem:[%s4 + $0x220] sm:$0xff]
    %v719 = vld [vmem:[%s4 + $0x228] sm:$0xff]
    %v720 = vld [vmem:[%s4 + $0x230] sm:$0xff]
    %v721 = vld [vmem:[%s4 + $0x238] sm:$0xff]
    %v722 = vld [vmem:[%s4 + $0x240] sm:$0xff]
    %v723 = vld [vmem:[%s4 + $0x248] sm:$0xff]
    %v724 = vld [vmem:[%s4 + $0x250] sm:$0xff]
    %v725 = vld [vmem:[%s4 + $0x258] sm:$0xff]
    %v726 = vld [vmem:[%s4 + $0x260] sm:$0xff]
    %v727 = vld [vmem:[%s4 + $0x268] sm:$0xff]
    %v728 = vld [vmem:[%s4 + $0x270] sm:$0xff]
    %v729 = vld [vmem:[%s4 + $0x278] sm:$0xff]
    %v730 = vld [vmem:[%s4 + $0x280] sm:$0xff]
    %v731 = vld [vmem:[%s4 + $0x288] sm:$0xff]
    %v732 = vld [vmem:[%s4 + $0x290] sm:$0xff]
    %v733 = vld [vmem:[%s4 + $0x298] sm:$0xff]
    %v734 = vld [vmem:[%s4 + $0x2a0] sm:$0xff]
    %v735 = vld [vmem:[%s4 + $0x2a8] sm:$0xff]
    %v736 = vld [vmem:[%s4 + $0x2b0] sm:$0xff]
    %v737 = vld [vmem:[%s4 + $0x2b8] sm:$0xff]
    %v738 = vld [vmem:[%s4 + $0x2c0] sm:$0xff]
    %v739 = vld [vmem:[%s4 + $0x2c8] sm:$0xff]
    %v740 = vld [vmem:[%s4 + $0x2d0] sm:$0xff]
    %v741 = vld [vmem:[%s4 + $0x2d8] sm:$0xff]
    %v742 = vld [vmem:[%s4 + $0x2e0] sm:$0xff]
    %v743 = vld [vmem:[%s4 + $0x2e8] sm:$0xff]
    %v744 = vld [vmem:[%s4 + $0x2f0] sm:$0xff]
    %v745 = vld [vmem:[%s4 + $0x2f8] sm:$0xff]
    %v746 = vld [vmem:[%s5] sm:$0x3]
    %v748 = vlaneseq
    %v749 = vshrl.u32 %v748, 7
    %v750 = vsub.s32 0, %v749
    %v751 = vrot.slane %v746, %v750
    %v752 = vlaneseq
    %v753 = vshrl.u32 %v752, 7
    %v754 = vsub.s32 1, %v753
    %v755 = vrot.slane %v746, %v754
    %v854 = vunpack.c.l.b16 %v650
    %v855 = vunpack.c.h.b16 %v650
    %v856 = vunpack.c.l.b16 %v651
    %v857 = vunpack.c.h.b16 %v651
    %v858 = vunpack.c.l.b16 %v652
    %v859 = vunpack.c.h.b16 %v652
    %v860 = vunpack.c.l.b16 %v653
    %v861 = vunpack.c.h.b16 %v653
    %v862 = vunpack.c.l.b16 %v654
    %v863 = vunpack.c.h.b16 %v654
    %v864 = vunpack.c.l.b16 %v655
    %v865 = vunpack.c.h.b16 %v655
    %v866 = vunpack.c.l.b16 %v656
    %v867 = vunpack.c.h.b16 %v656
    %v868 = vunpack.c.l.b16 %v657
    %v869 = vunpack.c.h.b16 %v657
    %v870 = vunpack.c.l.b16 %v658
    %v871 = vunpack.c.h.b16 %v658
    %v872 = vunpack.c.l.b16 %v659
    %v873 = vunpack.c.h.b16 %v659
    %v874 = vunpack.c.l.b16 %v660
    %v875 = vunpack.c.h.b16 %v660
    %v876 = vunpack.c.l.b16 %v661
    %v877 = vunpack.c.h.b16 %v661
    %v878 = vunpack.c.l.b16 %v662
    %v879 = vunpack.c.h.b16 %v662
    %v880 = vunpack.c.l.b16 %v663
    %v881 = vunpack.c.h.b16 %v663
    %v882 = vunpack.c.l.b16 %v664
    %v883 = vunpack.c.h.b16 %v664
    %v884 = vunpack.c.l.b16 %v665
    %v885 = vunpack.c.h.b16 %v665
    %v886 = vunpack.c.l.b16 %v666
    %v887 = vunpack.c.h.b16 %v666
    %v888 = vunpack.c.l.b16 %v667
    %v889 = vunpack.c.h.b16 %v667
    %v890 = vunpack.c.l.b16 %v668
    %v891 = vunpack.c.h.b16 %v668
    %v892 = vunpack.c.l.b16 %v669
    %v893 = vunpack.c.h.b16 %v669
    %v894 = vunpack.c.l.b16 %v670
    %v895 = vunpack.c.h.b16 %v670
    %v896 = vunpack.c.l.b16 %v671
    %v897 = vunpack.c.h.b16 %v671
    %v898 = vunpack.c.l.b16 %v672
    %v899 = vunpack.c.h.b16 %v672
    %v900 = vunpack.c.l.b16 %v673
    %v901 = vunpack.c.h.b16 %v673
    %v902 = vunpack.c.l.b16 %v674
    %v903 = vunpack.c.h.b16 %v674
    %v904 = vunpack.c.l.b16 %v675
    %v905 = vunpack.c.h.b16 %v675
    %v906 = vunpack.c.l.b16 %v676
    %v907 = vunpack.c.h.b16 %v676
    %v908 = vunpack.c.l.b16 %v677
    %v909 = vunpack.c.h.b16 %v677
    %v910 = vunpack.c.l.b16 %v678
    %v911 = vunpack.c.h.b16 %v678
    %v912 = vunpack.c.l.b16 %v679
    %v913 = vunpack.c.h.b16 %v679
    %v914 = vunpack.c.l.b16 %v680
    %v915 = vunpack.c.h.b16 %v680
    %v916 = vunpack.c.l.b16 %v681
    %v917 = vunpack.c.h.b16 %v681
    %v918 = vunpack.c.l.b16 %v682
    %v919 = vunpack.c.h.b16 %v682
    %v920 = vunpack.c.l.b16 %v683
    %v921 = vunpack.c.h.b16 %v683
    %v922 = vunpack.c.l.b16 %v684
    %v923 = vunpack.c.h.b16 %v684
    %v924 = vunpack.c.l.b16 %v685
    %v925 = vunpack.c.h.b16 %v685
    %v926 = vunpack.c.l.b16 %v686
    %v927 = vunpack.c.h.b16 %v686
    %v928 = vunpack.c.l.b16 %v687
    %v929 = vunpack.c.h.b16 %v687
    %v930 = vunpack.c.l.b16 %v688
    %v931 = vunpack.c.h.b16 %v688
    %v932 = vunpack.c.l.b16 %v689
    %v933 = vunpack.c.h.b16 %v689
    %v934 = vunpack.c.l.b16 %v690
    %v935 = vunpack.c.h.b16 %v690
    %v936 = vunpack.c.l.b16 %v691
    %v937 = vunpack.c.h.b16 %v691
    %v938 = vunpack.c.l.b16 %v692
    %v939 = vunpack.c.h.b16 %v692
    %v940 = vunpack.c.l.b16 %v693
    %v941 = vunpack.c.h.b16 %v693
    %v942 = vunpack.c.l.b16 %v694
    %v943 = vunpack.c.h.b16 %v694
    %v944 = vunpack.c.l.b16 %v695
    %v945 = vunpack.c.h.b16 %v695
    %v946 = vunpack.c.l.b16 %v696
    %v947 = vunpack.c.h.b16 %v696
    %v948 = vunpack.c.l.b16 %v697
    %v949 = vunpack.c.h.b16 %v697
    %v950 = vunpack.c.l.b16 %v698
    %v951 = vunpack.c.h.b16 %v698
    %v952 = vunpack.c.l.b16 %v699
    %v953 = vunpack.c.h.b16 %v699
    %v954 = vunpack.c.l.b16 %v700
    %v955 = vunpack.c.h.b16 %v700
    %v956 = vunpack.c.l.b16 %v701
    %v957 = vunpack.c.h.b16 %v701
    %v958 = vunpack.c.l.b16 %v702
    %v959 = vunpack.c.h.b16 %v702
    %v960 = vunpack.c.l.b16 %v703
    %v961 = vunpack.c.h.b16 %v703
    %v962 = vunpack.c.l.b16 %v704
    %v963 = vunpack.c.h.b16 %v704
    %v964 = vunpack.c.l.b16 %v705
    %v965 = vunpack.c.h.b16 %v705
    %v966 = vunpack.c.l.b16 %v706
    %v967 = vunpack.c.h.b16 %v706
    %v968 = vunpack.c.l.b16 %v707
    %v969 = vunpack.c.h.b16 %v707
    %v970 = vunpack.c.l.b16 %v708
    %v971 = vunpack.c.h.b16 %v708
    %v972 = vunpack.c.l.b16 %v709
    %v973 = vunpack.c.h.b16 %v709
    %v974 = vunpack.c.l.b16 %v710
    %v975 = vunpack.c.h.b16 %v710
    %v976 = vunpack.c.l.b16 %v711
    %v977 = vunpack.c.h.b16 %v711
    %v978 = vunpack.c.l.b16 %v712
    %v979 = vunpack.c.h.b16 %v712
    %v980 = vunpack.c.l.b16 %v713
    %v981 = vunpack.c.h.b16 %v713
    %v982 = vunpack.c.l.b16 %v714
    %v983 = vunpack.c.h.b16 %v714
    %v984 = vunpack.c.l.b16 %v715
    %v985 = vunpack.c.h.b16 %v715
    %v986 = vunpack.c.l.b16 %v716
    %v987 = vunpack.c.h.b16 %v716
    %v988 = vunpack.c.l.b16 %v717
    %v989 = vunpack.c.h.b16 %v717
    %v990 = vunpack.c.l.b16 %v718
    %v991 = vunpack.c.h.b16 %v718
    %v992 = vunpack.c.l.b16 %v719
    %v993 = vunpack.c.h.b16 %v719
    %v994 = vunpack.c.l.b16 %v720
    %v995 = vunpack.c.h.b16 %v720
    %v996 = vunpack.c.l.b16 %v721
    %v997 = vunpack.c.h.b16 %v721
    %v998 = vunpack.c.l.b16 %v722
    %v999 = vunpack.c.h.b16 %v722
    %v1000 = vunpack.c.l.b16 %v723
    %v1001 = vunpack.c.h.b16 %v723
    %v1002 = vunpack.c.l.b16 %v724
    %v1003 = vunpack.c.h.b16 %v724
    %v1004 = vunpack.c.l.b16 %v725
    %v1005 = vunpack.c.h.b16 %v725
    %v1006 = vunpack.c.l.b16 %v726
    %v1007 = vunpack.c.h.b16 %v726
    %v1008 = vunpack.c.l.b16 %v727
    %v1009 = vunpack.c.h.b16 %v727
    %v1010 = vunpack.c.l.b16 %v728
    %v1011 = vunpack.c.h.b16 %v728
    %v1012 = vunpack.c.l.b16 %v729
    %v1013 = vunpack.c.h.b16 %v729
    %v1014 = vunpack.c.l.b16 %v730
    %v1015 = vunpack.c.h.b16 %v730
    %v1016 = vunpack.c.l.b16 %v731
    %v1017 = vunpack.c.h.b16 %v731
    %v1018 = vunpack.c.l.b16 %v732
    %v1019 = vunpack.c.h.b16 %v732
    %v1020 = vunpack.c.l.b16 %v733
    %v1021 = vunpack.c.h.b16 %v733
    %v1022 = vunpack.c.l.b16 %v734
    %v1023 = vunpack.c.h.b16 %v734
    %v1024 = vunpack.c.l.b16 %v735
    %v1025 = vunpack.c.h.b16 %v735
    %v1026 = vunpack.c.l.b16 %v736
    %v1027 = vunpack.c.h.b16 %v736
    %v1028 = vunpack.c.l.b16 %v737
    %v1029 = vunpack.c.h.b16 %v737
    %v1030 = vunpack.c.l.b16 %v738
    %v1031 = vunpack.c.h.b16 %v738
    %v1032 = vunpack.c.l.b16 %v739
    %v1033 = vunpack.c.h.b16 %v739
    %v1034 = vunpack.c.l.b16 %v740
    %v1035 = vunpack.c.h.b16 %v740
    %v1036 = vunpack.c.l.b16 %v741
    %v1037 = vunpack.c.h.b16 %v741
    %v1038 = vunpack.c.l.b16 %v742
    %v1039 = vunpack.c.h.b16 %v742
    %v1040 = vunpack.c.l.b16 %v743
    %v1041 = vunpack.c.h.b16 %v743
    %v1042 = vunpack.c.l.b16 %v744
    %v1043 = vunpack.c.h.b16 %v744
    %v1044 = vunpack.c.l.b16 %v745
    %v1045 = vunpack.c.h.b16 %v745
    %v1046 = vpack.c.b16 %v856, %v854
    %v1047 = vpack.c.b16 %v857, %v855
    %v1048 = vpack.c.b16 %v860, %v858
    %v1049 = vpack.c.b16 %v861, %v859
    %v1050 = vpack.c.b16 %v864, %v862
    %v1051 = vpack.c.b16 %v865, %v863
    %v1052 = vpack.c.b16 %v868, %v866
    %v1053 = vpack.c.b16 %v869, %v867
    %v1054 = vpack.c.b16 %v872, %v870
    %v1055 = vpack.c.b16 %v873, %v871
    %v1056 = vpack.c.b16 %v876, %v874
    %v1057 = vpack.c.b16 %v877, %v875
    %v1058 = vpack.c.b16 %v880, %v878
    %v1059 = vpack.c.b16 %v881, %v879
    %v1060 = vpack.c.b16 %v884, %v882
    %v1061 = vpack.c.b16 %v885, %v883
    %v1062 = vpack.c.b16 %v888, %v886
    %v1063 = vpack.c.b16 %v889, %v887
    %v1064 = vpack.c.b16 %v892, %v890
    %v1065 = vpack.c.b16 %v893, %v891
    %v1066 = vpack.c.b16 %v896, %v894
    %v1067 = vpack.c.b16 %v897, %v895
    %v1068 = vpack.c.b16 %v900, %v898
    %v1069 = vpack.c.b16 %v901, %v899
    %v1070 = vpack.c.b16 %v904, %v902
    %v1071 = vpack.c.b16 %v905, %v903
    %v1072 = vpack.c.b16 %v908, %v906
    %v1073 = vpack.c.b16 %v909, %v907
    %v1074 = vpack.c.b16 %v912, %v910
    %v1075 = vpack.c.b16 %v913, %v911
    %v1076 = vpack.c.b16 %v916, %v914
    %v1077 = vpack.c.b16 %v917, %v915
    %v1078 = vpack.c.b16 %v920, %v918
    %v1079 = vpack.c.b16 %v921, %v919
    %v1080 = vpack.c.b16 %v924, %v922
    %v1081 = vpack.c.b16 %v925, %v923
    %v1082 = vpack.c.b16 %v928, %v926
    %v1083 = vpack.c.b16 %v929, %v927
    %v1084 = vpack.c.b16 %v932, %v930
    %v1085 = vpack.c.b16 %v933, %v931
    %v1086 = vpack.c.b16 %v936, %v934
    %v1087 = vpack.c.b16 %v937, %v935
    %v1088 = vpack.c.b16 %v940, %v938
    %v1089 = vpack.c.b16 %v941, %v939
    %v1090 = vpack.c.b16 %v944, %v942
    %v1091 = vpack.c.b16 %v945, %v943
    %v1092 = vpack.c.b16 %v948, %v946
    %v1093 = vpack.c.b16 %v949, %v947
    %v1094 = vpack.c.b16 %v952, %v950
    %v1095 = vpack.c.b16 %v953, %v951
    %v1096 = vpack.c.b16 %v956, %v954
    %v1097 = vpack.c.b16 %v957, %v955
    %v1098 = vpack.c.b16 %v960, %v958
    %v1099 = vpack.c.b16 %v961, %v959
    %v1100 = vpack.c.b16 %v964, %v962
    %v1101 = vpack.c.b16 %v965, %v963
    %v1102 = vpack.c.b16 %v968, %v966
    %v1103 = vpack.c.b16 %v969, %v967
    %v1104 = vpack.c.b16 %v972, %v970
    %v1105 = vpack.c.b16 %v973, %v971
    %v1106 = vpack.c.b16 %v976, %v974
    %v1107 = vpack.c.b16 %v977, %v975
    %v1108 = vpack.c.b16 %v980, %v978
    %v1109 = vpack.c.b16 %v981, %v979
    %v1110 = vpack.c.b16 %v984, %v982
    %v1111 = vpack.c.b16 %v985, %v983
    %v1112 = vpack.c.b16 %v988, %v986
    %v1113 = vpack.c.b16 %v989, %v987
    %v1114 = vpack.c.b16 %v992, %v990
    %v1115 = vpack.c.b16 %v993, %v991
    %v1116 = vpack.c.b16 %v996, %v994
    %v1117 = vpack.c.b16 %v997, %v995
    %v1118 = vpack.c.b16 %v1000, %v998
    %v1119 = vpack.c.b16 %v1001, %v999
    %v1120 = vpack.c.b16 %v1004, %v1002
    %v1121 = vpack.c.b16 %v1005, %v1003
    %v1122 = vpack.c.b16 %v1008, %v1006
    %v1123 = vpack.c.b16 %v1009, %v1007
    %v1124 = vpack.c.b16 %v1012, %v1010
    %v1125 = vpack.c.b16 %v1013, %v1011
    %v1126 = vpack.c.b16 %v1016, %v1014
    %v1127 = vpack.c.b16 %v1017, %v1015
    %v1128 = vpack.c.b16 %v1020, %v1018
    %v1129 = vpack.c.b16 %v1021, %v1019
    %v1130 = vpack.c.b16 %v1024, %v1022
    %v1131 = vpack.c.b16 %v1025, %v1023
    %v1132 = vpack.c.b16 %v1028, %v1026
    %v1133 = vpack.c.b16 %v1029, %v1027
    %v1134 = vpack.c.b16 %v1032, %v1030
    %v1135 = vpack.c.b16 %v1033, %v1031
    %v1136 = vpack.c.b16 %v1036, %v1034
    %v1137 = vpack.c.b16 %v1037, %v1035
    %v1138 = vpack.c.b16 %v1040, %v1038
    %v1139 = vpack.c.b16 %v1041, %v1039
    %v1140 = vpack.c.b16 %v1044, %v1042
    %v1141 = vpack.c.b16 %v1045, %v1043
    %1238 = vmatprep.subr.bf16.mxu0 %v1047
    %1239 = vmatpush1.bf16.msra.mxu0 %v1046
    %1240 = vmatprep.subr.bf16.mxu0 %v1049
    %1241 = vmatpush1.bf16.msra.mxu0 %v1048
    %1242 = vmatprep.subr.bf16.mxu0 %v1051
    %1243 = vmatpush1.bf16.msra.mxu0 %v1050
    %1244 = vmatprep.subr.bf16.mxu0 %v1053
    %1245 = vmatpush1.bf16.msra.mxu0 %v1052
    %1246 = vmatprep.subr.bf16.mxu0 %v1055
    %1247 = vmatpush1.bf16.msra.mxu0 %v1054
    %1248 = vmatprep.subr.bf16.mxu0 %v1057
    %1249 = vmatpush1.bf16.msra.mxu0 %v1056
    %1250 = vmatprep.subr.bf16.mxu0 %v1059
    %1251 = vmatpush1.bf16.msra.mxu0 %v1058
    %1252 = vmatprep.subr.bf16.mxu0 %v1061
    %1253 = vmatpush1.bf16.msra.mxu0 %v1060
    %1254 = vmatprep.subr.bf16.mxu0 %v1063
    %1255 = vmatpush1.bf16.msra.mxu0 %v1062
    %1256 = vmatprep.subr.bf16.mxu0 %v1065
    %1257 = vmatpush1.bf16.msra.mxu0 %v1064
    %1258 = vmatprep.subr.bf16.mxu0 %v1067
    %1259 = vmatpush1.bf16.msra.mxu0 %v1066
    %1260 = vmatprep.subr.bf16.mxu0 %v1069
    %1261 = vmatpush1.bf16.msra.mxu0 %v1068
    %1262 = vmatprep.subr.bf16.mxu0 %v1071
    %1263 = vmatpush1.bf16.msra.mxu0 %v1070
    %1264 = vmatprep.subr.bf16.mxu0 %v1073
    %1265 = vmatpush1.bf16.msra.mxu0 %v1072
    %1266 = vmatprep.subr.bf16.mxu0 %v1075
    %1267 = vmatpush1.bf16.msra.mxu0 %v1074
    %1268 = vmatprep.subr.bf16.mxu0 %v1077
    %1269 = vmatpush1.bf16.msra.mxu0 %v1076
    %1270 = vmatprep.mubr.bf16.mxu0 %v645
    %1271 = vmatmul.mubr.bf16.gmra.mrb[0].mxu0 %v644
    %v1272 = vpop.f32.mrb[0].mxu0
    %v1273 = vadd.f32 %v751, %v1272
    %v1274 = vpop.f32.mrb[0].mxu0
    %v1275 = vadd.f32 %v755, %v1274
    %v1276 = vpop.f32.mrb[0].mxu0
    %v1277 = vadd.f32 %v751, %v1276
    %v1278 = vpop.f32.mrb[0].mxu0
    %v1279 = vadd.f32 %v755, %v1278
    %1280 = vdwg.mxu0
    %1281 = vmatprep.subr.bf16.mxu0 %v1079
    %1282 = vmatpush1.bf16.msra.mxu0 %v1078
    %1283 = vmatprep.subr.bf16.mxu0 %v1081
    %1284 = vmatpush1.bf16.msra.mxu0 %v1080
    %1285 = vmatprep.subr.bf16.mxu0 %v1083
    %1286 = vmatpush1.bf16.msra.mxu0 %v1082
    %1287 = vmatprep.subr.bf16.mxu0 %v1085
    %1288 = vmatpush1.bf16.msra.mxu0 %v1084
    %1289 = vmatprep.subr.bf16.mxu0 %v1087
    %1290 = vmatpush1.bf16.msra.mxu0 %v1086
    %1291 = vmatprep.subr.bf16.mxu0 %v1089
    %1292 = vmatpush1.bf16.msra.mxu0 %v1088
    %1293 = vmatprep.subr.bf16.mxu0 %v1091
    %1294 = vmatpush1.bf16.msra.mxu0 %v1090
    %1295 = vmatprep.subr.bf16.mxu0 %v1093
    %1296 = vmatpush1.bf16.msra.mxu0 %v1092
    %1297 = vmatprep.subr.bf16.mxu0 %v1095
    %1298 = vmatpush1.bf16.msra.mxu0 %v1094
    %1299 = vmatprep.subr.bf16.mxu0 %v1097
    %1300 = vmatpush1.bf16.msra.mxu0 %v1096
    %1301 = vmatprep.subr.bf16.mxu0 %v1099
    %1302 = vmatpush1.bf16.msra.mxu0 %v1098
    %1303 = vmatprep.subr.bf16.mxu0 %v1101
    %1304 = vmatpush1.bf16.msra.mxu0 %v1100
    %1305 = vmatprep.subr.bf16.mxu0 %v1103
    %1306 = vmatpush1.bf16.msra.mxu0 %v1102
    %1307 = vmatprep.subr.bf16.mxu0 %v1105
    %1308 = vmatpush1.bf16.msra.mxu0 %v1104
    %1309 = vmatprep.subr.bf16.mxu0 %v1107
    %1310 = vmatpush1.bf16.msra.mxu0 %v1106
    %1311 = vmatprep.subr.bf16.mxu0 %v1109
    %1312 = vmatpush1.bf16.msra.mxu0 %v1108
    %1313 = vmatprep.mubr.bf16.mxu0 %v647
    %1314 = vmatmul.mubr.bf16.gmra.mrb[0].mxu0 %v646
    %v1315 = vpop.f32.mrb[0].mxu0
    %v1316 = vadd.f32 %v1273, %v1315
    %v1317 = vpop.f32.mrb[0].mxu0
    %v1318 = vadd.f32 %v1275, %v1317
    %v1319 = vpop.f32.mrb[0].mxu0
    %v1320 = vadd.f32 %v1277, %v1319
    %v1321 = vpop.f32.mrb[0].mxu0
    %v1322 = vadd.f32 %v1279, %v1321
    %1323 = vdwg.mxu0
    %1324 = vmatprep.subr.bf16.mxu0 %v1111
    %1325 = vmatpush1.bf16.msra.mxu0 %v1110
    %1326 = vmatprep.subr.bf16.mxu0 %v1113
    %1327 = vmatpush1.bf16.msra.mxu0 %v1112
    %1328 = vmatprep.subr.bf16.mxu0 %v1115
    %1329 = vmatpush1.bf16.msra.mxu0 %v1114
    %1330 = vmatprep.subr.bf16.mxu0 %v1117
    %1331 = vmatpush1.bf16.msra.mxu0 %v1116
    %1332 = vmatprep.subr.bf16.mxu0 %v1119
    %1333 = vmatpush1.bf16.msra.mxu0 %v1118
    %1334 = vmatprep.subr.bf16.mxu0 %v1121
    %1335 = vmatpush1.bf16.msra.mxu0 %v1120
    %1336 = vmatprep.subr.bf16.mxu0 %v1123
    %1337 = vmatpush1.bf16.msra.mxu0 %v1122
    %1338 = vmatprep.subr.bf16.mxu0 %v1125
    %1339 = vmatpush1.bf16.msra.mxu0 %v1124
    %1340 = vmatprep.subr.bf16.mxu0 %v1127
    %1341 = vmatpush1.bf16.msra.mxu0 %v1126
    %1342 = vmatprep.subr.bf16.mxu0 %v1129
    %1343 = vmatpush1.bf16.msra.mxu0 %v1128
    %1344 = vmatprep.subr.bf16.mxu0 %v1131
    %1345 = vmatpush1.bf16.msra.mxu0 %v1130
    %1346 = vmatprep.subr.bf16.mxu0 %v1133
    %1347 = vmatpush1.bf16.msra.mxu0 %v1132
    %1348 = vmatprep.subr.bf16.mxu0 %v1135
    %1349 = vmatpush1.bf16.msra.mxu0 %v1134
    %1350 = vmatprep.subr.bf16.mxu0 %v1137
    %1351 = vmatpush1.bf16.msra.mxu0 %v1136
    %1352 = vmatprep.subr.bf16.mxu0 %v1139
    %1353 = vmatpush1.bf16.msra.mxu0 %v1138
    %1354 = vmatprep.subr.bf16.mxu0 %v1141
    %1355 = vmatpush1.bf16.msra.mxu0 %v1140
    %1356 = vmatprep.mubr.bf16.mxu0 %v649
    %1357 = vmatmul.mubr.bf16.gmra.mrb[0].mxu0 %v648
    %v1358 = vpop.f32.mrb[0].mxu0
    %v1359 = vadd.f32 %v1316, %v1358
    %v1360 = vpop.f32.mrb[0].mxu0
    %v1361 = vadd.f32 %v1318, %v1360
    %v1362 = vpop.f32.mrb[0].mxu0
    %v1363 = vadd.f32 %v1320, %v1362
    %v1364 = vpop.f32.mrb[0].mxu0
    %v1365 = vadd.f32 %v1322, %v1364
    %1366 = vdwg.mxu0
    %1367 = vst [vmem:[#allocation4] sm:$0xff] %v1359
    %1368 = vst.msk [vmem:[#allocation4 + $0x8] sm:$0xff] %vm499, %v1361
    %1369 = vst [vmem:[#allocation4 + $0x10] sm:$0xff] %v1363
    %1370 = vst.msk [vmem:[#allocation4 + $0x18] sm:$0xff] %vm499, %v1365
    // Predicated region
    $region22: #{tpu_custom_call.1} parent=1 // pred_check
      _
    $region23: #{tpu_custom_call.1} parent=1 // pred_check_branch
      %1372 = sbr.rel (0) target = $region25
    $region24: #{tpu_custom_call.1} parent=1 // pred_region
      %s1374 = ssub.s32 512, 512
      %1375 = vsyncadd [#allocation5], %s1374
      %s1376 = sshll.u32 [#allocation4], 4
      %s1377 = int_to_ptr.vmem [resolvable:$true] %s1376
      %1382 = dma.vmem_to_hbm [thread:$0]  %s1377, 512, %s6, [#allocation5], 256, 256, 16
    $region25: #{tpu_custom_call.1} parent=1 // pred_fallthru
      _
    // Predicated region
    $region26: #{tpu_custom_call.1} parent=1 // pred_check
      _
    $region27: #{tpu_custom_call.1} parent=1 // pred_check_branch
      %1384 = sbr.rel (0) target = $region29
    $region28: #{tpu_custom_call.1} parent=1 // pred_region
      %1385 = dma.done [#allocation5], 512
    $region29: #{tpu_custom_call.1} parent=1 // pred_fallthru
      _
    %1386 = vsyncpa [#allocation5], 1

</llo_original>
